<compile_context>
chip_gen: v5e
topology: v5e:2x2
jax: 0.10.0
libtpu: 0.0.40
codegen_flags: <defaults>
</compile_context>

<pallas_src>
import functools
import math

import jax
import jax.numpy as jnp
from jax import lax
from jax.experimental import pallas as pl
from jax.experimental.pallas import tpu as pltpu


def _oconv1d_kernel(*refs, stride, dilation, has_halo):
    """One (batch, L-tile) output block of the permuted-weight conv1d.

    xc_ref : (1, C_in, TL*stride)   current input tile (zero-padded x, NCL)
    xh_ref : (1, C_in, HALO_BLK)    lanes immediately following the tile
                                    (present only when K > 1)
    w_ref  : (C_out, C_in*K)        pre-permuted weight, column index = i*K + k
    b_ref  : (C_out, 1)             pre-permuted bias column
    o_ref  : (1, C_out, TL)         output tile (lane-dense: L on lanes)
    """
    if has_halo:
        xc_ref, xh_ref, w_ref, b_ref, o_ref = refs
    else:
        xc_ref, w_ref, b_ref, o_ref = refs

    c_in = xc_ref.shape[1]
    c_out, tl = o_ref.shape[1], o_ref.shape[2]
    n_taps = w_ref.shape[1] // c_in

    # Stitch the halo onto the current tile once; every per-tap window below
    # is then a *static* lane-offset slice of this value.
    if has_halo:
        xwin = jnp.concatenate([xc_ref[0], xh_ref[0]], axis=-1)  # (C_in, TL*s + halo)
    else:
        xwin = xc_ref[0]                                         # (C_in, TL*s)
    wv = w_ref[...]                                              # (C_out, C_in*K)

    # Bias folded into the accumulator init (avoids a separate bias-add pass).
    acc = jnp.broadcast_to(b_ref[...], (c_out, tl)).astype(jnp.float32)

    tap_span = (tl - 1) * stride + 1
    for k in range(n_taps):                     # K and C_in are tiny & static
        off = k * dilation
        if stride == 1:
            xs = lax.slice(xwin, (0, off), (c_in, off + tl))            # (C_in, TL)
        else:
            # TODO(synk): lane-strided slice; validate lowering for stride > 1
            # (the demo configuration uses stride == 1).
            xs = lax.slice(xwin, (0, off), (c_in, off + tap_span), (1, stride))
        for i in range(c_in):
            col = i * n_taps + k
            w_col = lax.slice(wv, (0, col), (c_out, col + 1))           # (C_out, 1)
            acc = acc + w_col * xs[i:i + 1, :]   # VPU outer-product MAC (no MXU)

    o_ref[0] = acc.astype(o_ref.dtype)


def oconv1d_pallas(x_ncl, weight_oik, bias, permutation, *,
                   stride=1, padding=0, dilation=1, groups=1):
    """x_ncl: (N, C_in, L); weight_oik: (C_out, C_in, K); bias: (C_out,) or None;
    permutation: (C_out, C_out).  Returns (N, C_out, L_out) like F.conv1d with
    weight einsum('ao,oik->aik', P, W) and bias P @ b."""
    if groups != 1:
        raise NotImplementedError("groups > 1")   # TODO(synk): grouped conv
    n, c_in, l_in = x_ncl.shape
    c_out, _, k = weight_oik.shape
    l_out = (l_in + 2 * padding - dilation * (k - 1) - 1) // stride + 1
    assert l_out > 0

    # ---- hoisted (done once, outside the grid): permuted weight & bias ----
    w_perm = jnp.einsum('ao,oik->aik', permutation, weight_oik)        # (O, I, K)
    w_flat = w_perm.reshape(c_out, c_in * k).astype(jnp.float32)       # col = i*K+k
    b_perm = (permutation @ bias) if bias is not None \
        else jnp.zeros((c_out,), jnp.float32)
    b_col = b_perm.reshape(c_out, 1).astype(jnp.float32)

    # ---- tiling: lane-dense output tiles of TL output positions ----
    tl = int(min(2048, 128 * pl.cdiv(l_out, 128)))    # multiple of 128 lanes
    halo = dilation * (k - 1)
    has_halo = halo > 0
    if halo <= 128:
        halo_blk = 128
    else:                                             # very large dilation*(K-1)
        while tl * stride < halo:
            tl += 128
        halo_blk = tl * stride
    n_lt = int(pl.cdiv(l_out, tl))
    halo_ratio = (tl * stride) // halo_blk            # exact by construction

    # ---- zero-pad along L only (conv padding + tile/halo round-up); the NCL
    #      layout is kept so there are no wrapper transposes ----
    need = n_lt * tl * stride + (halo_blk if has_halo else 0)
    right = max(0, need - (l_in + padding))
    x_pad = jnp.pad(x_ncl, ((0, 0), (0, 0), (padding, right)))

    in_specs = [pl.BlockSpec((1, c_in, tl * stride), lambda b, j: (b, 0, j))]
    operands = [x_pad]
    if has_halo:
        # right halo: second view of the same padded x, so all in-kernel lane
        # offsets stay static.
        in_specs.append(pl.BlockSpec((1, c_in, halo_blk),
                                     lambda b, j: (b, 0, (j + 1) * halo_ratio)))
        operands.append(x_pad)
    in_specs += [pl.BlockSpec((c_out, c_in * k), lambda b, j: (0, 0)),
                 pl.BlockSpec((c_out, 1), lambda b, j: (0, 0))]
    operands += [w_flat, b_col]

    kernel = functools.partial(_oconv1d_kernel, stride=stride, dilation=dilation,
                               has_halo=has_halo)
    out = pl.pallas_call(
        kernel,
        out_shape=jax.ShapeDtypeStruct((n, c_out, l_out), x_ncl.dtype),
        grid=(n, n_lt),
        in_specs=in_specs,
        out_specs=pl.BlockSpec((1, c_out, tl), lambda b, j: (b, 0, j)),
        compiler_params=pltpu.CompilerParams(
            dimension_semantics=("parallel", "parallel"),
            vmem_limit_bytes=64 * 1024 * 1024),
    )(*operands)
    return out


def _reference(x_ncl, weight_oik, bias, permutation, *, stride, padding, dilation):
    """Pure-JAX reference of the intended forward."""
    w_perm = jnp.einsum('ao,oik->aik', permutation, weight_oik)
    out = lax.conv_general_dilated(
        x_ncl, w_perm,
        window_strides=(stride,),
        padding=[(padding, padding)],
        rhs_dilation=(dilation,),
        dimension_numbers=('NCH', 'OIH', 'NCH'))
    if bias is not None:
        out = out + (permutation @ bias)[None, :, None]
    return out


def _check(x, weight, bias, permutation, *, stride, padding, dilation):
    out = oconv1d_pallas(x, weight, bias, permutation,
                         stride=stride, padding=padding, dilation=dilation)
    out = jax.block_until_ready(out)
    ref = _reference(x, weight, bias, permutation,
                     stride=stride, padding=padding, dilation=dilation)
    assert out.shape == ref.shape, (out.shape, ref.shape)
    err = float(jnp.max(jnp.abs(out - ref)))
    assert err < 1e-5, err


if __name__ == "__main__":
    # module config: oConv1d(in=4, out=8, kernel_size=3, stride=1, padding=1,
    #                        dilation=1, groups=1, bias=True)
    in_channels, out_channels, ksize = 4, 8, 3
    stride, padding, dilation = 1, 1, 1
    N, L = 2, 16

    key = jax.random.PRNGKey(0)
    k_x, k_w, k_b, k_p = jax.random.split(key, 4)

    # deterministic "kaiming_uniform(a=sqrt(5))"-style init
    fan_in = in_channels * ksize
    gain = math.sqrt(2.0 / (1.0 + 5.0))
    w_bound = gain * math.sqrt(3.0 / fan_in)
    weight = jax.random.uniform(k_w, (out_channels, in_channels, ksize),
                                jnp.float32, -w_bound, w_bound)
    b_bound = 1.0 / math.sqrt(fan_in)
    bias = jax.random.uniform(k_b, (out_channels,), jnp.float32, -b_bound, b_bound)

    # deterministic permutation matrix (out_channels x out_channels)
    perm_idx = jax.random.permutation(k_p, out_channels)
    permutation = jnp.zeros((out_channels, out_channels), jnp.float32)
    permutation = permutation.at[jnp.arange(out_channels), perm_idx].set(1.0)

    x = jax.random.normal(k_x, (N, in_channels, L), jnp.float32)
    _check(x, weight, bias, permutation,
           stride=stride, padding=padding, dilation=dilation)

    # Secondary check: multi-tile L path (exercises the halo view across tiles).
    x_big = jax.random.normal(jax.random.PRNGKey(1), (1, in_channels, 300), jnp.float32)
    _check(x_big, weight, bias, permutation,
           stride=stride, padding=padding, dilation=dilation)

    print("KERNEL_OK")
</pallas_src>

<mosaic_0001>
module attributes {stable_mosaic.version = 11 : i64} {
  func.func @_oconv1d_kernel(%arg0: i32, %arg1: i32, %arg2: memref<1x4x128xf32, #tpu.memory_space<vmem>>, %arg3: memref<1x4x128xf32, #tpu.memory_space<vmem>>, %arg4: memref<8x12xf32, #tpu.memory_space<vmem>>, %arg5: memref<8x1xf32, #tpu.memory_space<vmem>>, %arg6: memref<1x8x128xf32, #tpu.memory_space<vmem>>) attributes {dimension_semantics = [#tpu.dimension_semantics<parallel>, #tpu.dimension_semantics<parallel>], iteration_bounds = array<i64: 2, 1>, scalar_prefetch = 0 : i64, scratch_operands = 0 : i64, tpu.core_type = #tpu.core_type<tc>, window_params = [{transform_indices = @transform_0, window_bounds = array<i64: 1, 4, 128>}, {transform_indices = @transform_1, window_bounds = array<i64: 1, 4, 128>}, {pipeline_mode = #tpu.pipeline_mode<synchronous>, transform_indices = @transform_2, window_bounds = array<i64: 8, 12>}, {pipeline_mode = #tpu.pipeline_mode<synchronous>, transform_indices = @transform_3, window_bounds = array<i64: 8, 1>}, {transform_indices = @transform_4, window_bounds = array<i64: 1, 8, 128>}]} {
    %c0 = arith.constant 0 : index
    %c0_0 = arith.constant 0 : index
    %c0_1 = arith.constant 0 : index
    %0 = vector.load %arg2[%c0, %c0_0, %c0_1] : memref<1x4x128xf32, #tpu.memory_space<vmem>>, vector<1x4x128xf32>
    %1 = vector.shape_cast %0 : vector<1x4x128xf32> to vector<4x128xf32>
    %c0_2 = arith.constant 0 : index
    %c0_3 = arith.constant 0 : index
    %c0_4 = arith.constant 0 : index
    %2 = vector.load %arg3[%c0_2, %c0_3, %c0_4] : memref<1x4x128xf32, #tpu.memory_space<vmem>>, vector<1x4x128xf32>
    %3 = vector.shape_cast %2 : vector<1x4x128xf32> to vector<4x128xf32>
    %4 = tpu.concatenate %1, %3 in 1 : vector<4x128xf32>, vector<4x128xf32> -> vector<4x256xf32>
    %c0_5 = arith.constant 0 : index
    %c0_6 = arith.constant 0 : index
    %5 = vector.load %arg4[%c0_5, %c0_6] : memref<8x12xf32, #tpu.memory_space<vmem>>, vector<8x12xf32>
    %c0_7 = arith.constant 0 : index
    %c0_8 = arith.constant 0 : index
    %6 = vector.load %arg5[%c0_7, %c0_8] : memref<8x1xf32, #tpu.memory_space<vmem>>, vector<8x1xf32>
    %7 = vector.shape_cast %6 : vector<8x1xf32> to vector<8x1xf32>
    %8 = vector.broadcast %7 : vector<8x1xf32> to vector<8x128xf32>
    %9 = vector.extract_strided_slice %4 {offsets = [0, 0], sizes = [4, 128], strides = [1, 1]} : vector<4x256xf32> to vector<4x128xf32>
    %10 = vector.extract_strided_slice %5 {offsets = [0, 0], sizes = [8, 1], strides = [1, 1]} : vector<8x12xf32> to vector<8x1xf32>
    %11 = vector.extract_strided_slice %9 {offsets = [0, 0], sizes = [1, 128], strides = [1, 1]} : vector<4x128xf32> to vector<1x128xf32>
    %12 = vector.broadcast %10 : vector<8x1xf32> to vector<8x128xf32>
    %13 = vector.broadcast %11 : vector<1x128xf32> to vector<8x128xf32>
    %14 = arith.mulf %12, %13 : vector<8x128xf32>
    %15 = arith.addf %8, %14 : vector<8x128xf32>
    %16 = vector.extract_strided_slice %5 {offsets = [0, 3], sizes = [8, 1], strides = [1, 1]} : vector<8x12xf32> to vector<8x1xf32>
    %17 = vector.extract_strided_slice %9 {offsets = [1, 0], sizes = [1, 128], strides = [1, 1]} : vector<4x128xf32> to vector<1x128xf32>
    %18 = vector.broadcast %16 : vector<8x1xf32> to vector<8x128xf32>
    %19 = vector.broadcast %17 : vector<1x128xf32> to vector<8x128xf32>
    %20 = arith.mulf %18, %19 : vector<8x128xf32>
    %21 = arith.addf %15, %20 : vector<8x128xf32>
    %22 = vector.extract_strided_slice %5 {offsets = [0, 6], sizes = [8, 1], strides = [1, 1]} : vector<8x12xf32> to vector<8x1xf32>
    %23 = vector.extract_strided_slice %9 {offsets = [2, 0], sizes = [1, 128], strides = [1, 1]} : vector<4x128xf32> to vector<1x128xf32>
    %24 = vector.broadcast %22 : vector<8x1xf32> to vector<8x128xf32>
    %25 = vector.broadcast %23 : vector<1x128xf32> to vector<8x128xf32>
    %26 = arith.mulf %24, %25 : vector<8x128xf32>
    %27 = arith.addf %21, %26 : vector<8x128xf32>
    %28 = vector.extract_strided_slice %5 {offsets = [0, 9], sizes = [8, 1], strides = [1, 1]} : vector<8x12xf32> to vector<8x1xf32>
    %29 = vector.extract_strided_slice %9 {offsets = [3, 0], sizes = [1, 128], strides = [1, 1]} : vector<4x128xf32> to vector<1x128xf32>
    %30 = vector.broadcast %28 : vector<8x1xf32> to vector<8x128xf32>
    %31 = vector.broadcast %29 : vector<1x128xf32> to vector<8x128xf32>
    %32 = arith.mulf %30, %31 : vector<8x128xf32>
    %33 = arith.addf %27, %32 : vector<8x128xf32>
    %34 = vector.extract_strided_slice %4 {offsets = [0, 1], sizes = [4, 128], strides = [1, 1]} : vector<4x256xf32> to vector<4x128xf32>
    %35 = vector.extract_strided_slice %5 {offsets = [0, 1], sizes = [8, 1], strides = [1, 1]} : vector<8x12xf32> to vector<8x1xf32>
    %36 = vector.extract_strided_slice %34 {offsets = [0, 0], sizes = [1, 128], strides = [1, 1]} : vector<4x128xf32> to vector<1x128xf32>
    %37 = vector.broadcast %35 : vector<8x1xf32> to vector<8x128xf32>
    %38 = vector.broadcast %36 : vector<1x128xf32> to vector<8x128xf32>
    %39 = arith.mulf %37, %38 : vector<8x128xf32>
    %40 = arith.addf %33, %39 : vector<8x128xf32>
    %41 = vector.extract_strided_slice %5 {offsets = [0, 4], sizes = [8, 1], strides = [1, 1]} : vector<8x12xf32> to vector<8x1xf32>
    %42 = vector.extract_strided_slice %34 {offsets = [1, 0], sizes = [1, 128], strides = [1, 1]} : vector<4x128xf32> to vector<1x128xf32>
    %43 = vector.broadcast %41 : vector<8x1xf32> to vector<8x128xf32>
    %44 = vector.broadcast %42 : vector<1x128xf32> to vector<8x128xf32>
    %45 = arith.mulf %43, %44 : vector<8x128xf32>
    %46 = arith.addf %40, %45 : vector<8x128xf32>
    %47 = vector.extract_strided_slice %5 {offsets = [0, 7], sizes = [8, 1], strides = [1, 1]} : vector<8x12xf32> to vector<8x1xf32>
    %48 = vector.extract_strided_slice %34 {offsets = [2, 0], sizes = [1, 128], strides = [1, 1]} : vector<4x128xf32> to vector<1x128xf32>
    %49 = vector.broadcast %47 : vector<8x1xf32> to vector<8x128xf32>
    %50 = vector.broadcast %48 : vector<1x128xf32> to vector<8x128xf32>
    %51 = arith.mulf %49, %50 : vector<8x128xf32>
    %52 = arith.addf %46, %51 : vector<8x128xf32>
    %53 = vector.extract_strided_slice %5 {offsets = [0, 10], sizes = [8, 1], strides = [1, 1]} : vector<8x12xf32> to vector<8x1xf32>
    %54 = vector.extract_strided_slice %34 {offsets = [3, 0], sizes = [1, 128], strides = [1, 1]} : vector<4x128xf32> to vector<1x128xf32>
    %55 = vector.broadcast %53 : vector<8x1xf32> to vector<8x128xf32>
    %56 = vector.broadcast %54 : vector<1x128xf32> to vector<8x128xf32>
    %57 = arith.mulf %55, %56 : vector<8x128xf32>
    %58 = arith.addf %52, %57 : vector<8x128xf32>
    %59 = vector.extract_strided_slice %4 {offsets = [0, 2], sizes = [4, 128], strides = [1, 1]} : vector<4x256xf32> to vector<4x128xf32>
    %60 = vector.extract_strided_slice %5 {offsets = [0, 2], sizes = [8, 1], strides = [1, 1]} : vector<8x12xf32> to vector<8x1xf32>
    %61 = vector.extract_strided_slice %59 {offsets = [0, 0], sizes = [1, 128], strides = [1, 1]} : vector<4x128xf32> to vector<1x128xf32>
    %62 = vector.broadcast %60 : vector<8x1xf32> to vector<8x128xf32>
    %63 = vector.broadcast %61 : vector<1x128xf32> to vector<8x128xf32>
    %64 = arith.mulf %62, %63 : vector<8x128xf32>
    %65 = arith.addf %58, %64 : vector<8x128xf32>
    %66 = vector.extract_strided_slice %5 {offsets = [0, 5], sizes = [8, 1], strides = [1, 1]} : vector<8x12xf32> to vector<8x1xf32>
    %67 = vector.extract_strided_slice %59 {offsets = [1, 0], sizes = [1, 128], strides = [1, 1]} : vector<4x128xf32> to vector<1x128xf32>
    %68 = vector.broadcast %66 : vector<8x1xf32> to vector<8x128xf32>
    %69 = vector.broadcast %67 : vector<1x128xf32> to vector<8x128xf32>
    %70 = arith.mulf %68, %69 : vector<8x128xf32>
    %71 = arith.addf %65, %70 : vector<8x128xf32>
    %72 = vector.extract_strided_slice %5 {offsets = [0, 8], sizes = [8, 1], strides = [1, 1]} : vector<8x12xf32> to vector<8x1xf32>
    %73 = vector.extract_strided_slice %59 {offsets = [2, 0], sizes = [1, 128], strides = [1, 1]} : vector<4x128xf32> to vector<1x128xf32>
    %74 = vector.broadcast %72 : vector<8x1xf32> to vector<8x128xf32>
    %75 = vector.broadcast %73 : vector<1x128xf32> to vector<8x128xf32>
    %76 = arith.mulf %74, %75 : vector<8x128xf32>
    %77 = arith.addf %71, %76 : vector<8x128xf32>
    %78 = vector.extract_strided_slice %5 {offsets = [0, 11], sizes = [8, 1], strides = [1, 1]} : vector<8x12xf32> to vector<8x1xf32>
    %79 = vector.extract_strided_slice %59 {offsets = [3, 0], sizes = [1, 128], strides = [1, 1]} : vector<4x128xf32> to vector<1x128xf32>
    %80 = vector.broadcast %78 : vector<8x1xf32> to vector<8x128xf32>
    %81 = vector.broadcast %79 : vector<1x128xf32> to vector<8x128xf32>
    %82 = arith.mulf %80, %81 : vector<8x128xf32>
    %83 = arith.addf %77, %82 : vector<8x128xf32>
    %c0_9 = arith.constant 0 : index
    %c0_10 = arith.constant 0 : index
    %c0_11 = arith.constant 0 : index
    %84 = vector.load %arg6[%c0_9, %c0_10, %c0_11] : memref<1x8x128xf32, #tpu.memory_space<vmem>>, vector<1x8x128xf32>
    %85 = vector.shape_cast %84 : vector<1x8x128xf32> to vector<8x128xf32>
    %86 = vector.shape_cast %83 : vector<8x128xf32> to vector<1x8x128xf32>
    tpu.vector_store %arg6[%c0_9, %c0_10, %c0_11], %86 {strides = array<i32>} : memref<1x8x128xf32, #tpu.memory_space<vmem>>, vector<1x8x128xf32>,
    return
  }
  func.func @transform_0(%arg0: i32, %arg1: i32) -> (i32, i32, i32) {
    %c0_i32 = arith.constant 0 : i32
    %c0_i32_0 = arith.constant 0 : i32
    return %arg0, %c0_i32, %arg1 : i32, i32, i32
  }
  func.func @transform_1(%arg0: i32, %arg1: i32) -> (i32, i32, i32) {
    %c1_i32 = arith.constant 1 : i32
    %0 = arith.addi %arg1, %c1_i32 : i32
    %c1_i32_0 = arith.constant 1 : i32
    %1 = arith.muli %0, %c1_i32_0 : i32
    %c0_i32 = arith.constant 0 : i32
    %c0_i32_1 = arith.constant 0 : i32
    return %arg0, %c0_i32, %1 : i32, i32, i32
  }
  func.func @transform_2(%arg0: i32, %arg1: i32) -> (i32, i32) {
    %c0_i32 = arith.constant 0 : i32
    %c0_i32_0 = arith.constant 0 : i32
    %c0_i32_1 = arith.constant 0 : i32
    return %c0_i32, %c0_i32_0 : i32, i32
  }
  func.func @transform_3(%arg0: i32, %arg1: i32) -> (i32, i32) {
    %c0_i32 = arith.constant 0 : i32
    %c0_i32_0 = arith.constant 0 : i32
    %c0_i32_1 = arith.constant 0 : i32
    return %c0_i32, %c0_i32_0 : i32, i32
  }
  func.func @transform_4(%arg0: i32, %arg1: i32) -> (i32, i32, i32) {
    %c0_i32 = arith.constant 0 : i32
    %c0_i32_0 = arith.constant 0 : i32
    return %arg0, %c0_i32, %arg1 : i32, i32, i32
  }
}

</mosaic_0001>

<llo_original>
// kernel: tpu_custom_call.1
$region0: #{tpu_custom_call.1}
  #allocation0 [shape = 'u32[]', space=smem, size = 0x4, offset = 0x4, fixed_abs, tag = 'smem constant byte address 0x4 - core index']
  #allocation1 [shape = 'u32[72,128]{1,0:T(1,128)}', space=vmem, size = 0x9000, scoped, tag = 'internal scratch']
  %s0 = inlined_call_operand.hbm [shape: f32[2,4,256], index: 0, kind: input, shape index: {}]
  %s1 = inlined_call_operand.hbm [shape: f32[2,4,256], index: 1, kind: input, shape index: {}]
  %s2 = inlined_call_operand.vmem [shape: f32[8,12], index: 2, kind: input, shape index: {}]
  %s3 = inlined_call_operand.vmem [shape: f32[8,1], index: 3, kind: input, shape index: {}]
  %s4 = inlined_call_operand.hbm [shape: f32[2,8,16], index: 4, kind: output, shape index: {}]
  %s5 = sld [smem:[#allocation0]]
  $region57: #{tpu_custom_call.1} parent=0
    _
  %s7 = ssub.s32 1, %s5
  %s8 = scalar_select 0, %s7, %s5
  $region1: #{tpu_custom_call.1} parent=0
    #allocation2 [shape = 'u8[4096]{0}', space=vmem, size = 0x1000, scoped, tag = 'input window, operand 0']
    #allocation3 [shape = 's32[2]{0}', space=sflag, size = 0x8, scoped, tag = 'scoped memory for tpu_custom_call.1']
    #allocation4 [shape = 's32[2]{0}', space=sflag, size = 0x8, scoped, tag = 'scoped memory for tpu_custom_call.1']
    #allocation5 [shape = 'u8[4096]{0}', space=vmem, size = 0x1000, scoped, tag = 'input window, operand 1']
    #allocation6 [shape = 's32[2]{0}', space=sflag, size = 0x8, scoped, tag = 'scoped memory for tpu_custom_call.1']
    #allocation7 [shape = 'u8[8192]{0}', space=vmem, size = 0x2000, scoped, tag = 'output window, operand 0']
    %9 = vsyncpa [#allocation3], 0
    %s10 = scalar_lea.sflag [#allocation3], 1
    %11 = vsyncpa %s10, 0
    %12 = vsyncpa [#allocation6], 0
    %s13 = scalar_lea.sflag [#allocation6], 1
    %14 = vsyncpa %s13, 0
    %15 = vsyncpa [#allocation4], 0
    %s16 = scalar_lea.sflag [#allocation4], 1
    %17 = vsyncpa %s16, 0
    loop: start=0, step=1, limit=4
    $region2: #{tpu_custom_call.1} parent=1 // loop_pre_header
      _
    $region3: #{tpu_custom_call.1} parent=1 // loop_header
      %s19 = sphi 0, %s23
      %p20 = scmp.ge.s32.totalorder %s19, 4
      %s26 = sphi 0, %s38
      %s27 = sphi 0, %s34
      %s28 = sphi 0, %s26
      %s29 = sphi 0, %s27
      %s30 = sphi 0, %s28
      %s31 = sphi 0, %s29
      %s43 = sphi 0, %s45
      %s46 = sphi 0, %s43
      %s47 = sphi 0, %s46
      %s63 = sphi 0, %s47
      %s73 = sphi 0, %s75
      %s76 = sphi 0, %s73
      %s77 = sphi 0, %s76
      %s93 = sphi 0, %s77
      %s97 = sphi 0, %s97
      %s99 = sphi 0, %s97
      %s100 = sphi 0, %s99
      %s114 = sphi 0, %s100
      %s118 = sphi 0, %s118
      %s120 = sphi 0, %s118
      %s121 = sphi 0, %s120
      %s135 = sphi 0, %s121
      %s143 = sphi 0, %s145
      %s146 = sphi 0, %s143
      %s147 = sphi 0, %s146
      %s163 = sphi 0, %s147
    $region4: #{tpu_custom_call.1} parent=1 // loop_header_branch
      %22 = sbr.rel (%p20) target = $region8
    $region5: #{tpu_custom_call.1} parent=1 // loop_body
      %s24 = ssub.s32 %s19, 1
      %s25 = ssub.s32 %s19, 2
      %s32 = sadd.s32 1, %s27
      %p33 = scmp.ge.s32.totalorder %s32, 1
      %s34 = scalar_select %p33, 0, %s32
      %s35 = sadd.s32 1, %s26
      %s36 = scalar_select %p33, %s35, %s26
      %p37 = scmp.ge.s32.totalorder %s36, 2
      %s38 = scalar_select %p37, 0, %s36
      %s39 = ssub.s32 %s26, %s38
      %s40 = ssub.s32 %s27, %s34
      %s41 = sor.u32 %s39, %s40
      %p42 = scmp.eq.s32.totalorder %s41, 0
      %s44 = sadd.s32 %s43, 1
      %s45 = scalar_select %p42, %s43, %s44
      %p48 = pneg %p42
      %p49 = scmp.eq.s32.totalorder %s19, 1
      %p50 = por %p48, %p49
      %p51 = scmp.ne.s32.totalorder %s43, %s46
      %p52 = scmp.eq.s32.totalorder %s19, 0
      %p53 = por %p51, %p52
      %p54 = scmp.ne.s32.totalorder %s43, %s46
      %p55 = scmp.eq.s32.totalorder %s24, 1
      %p56 = por %p54, %p55
      %p57 = scmp.ne.s32.totalorder %s46, %s47
      %p58 = scmp.eq.s32.totalorder %s24, 0
      %p59 = por %p57, %p58
      %p60 = scmp.ne.s32.totalorder %s46, %s47
      %p61 = scmp.eq.s32.totalorder %s25, 1
      %p62 = por %p60, %p61
      %p64 = scmp.ne.s32.totalorder %s47, %s63
      %p65 = scmp.eq.s32.totalorder %s25, 0
      %p66 = por %p64, %p65
      %s67 = sadd.s32 %s27, 1
      %s68 = sadd.s32 %s34, 1
      %s69 = ssub.s32 %s26, %s38
      %s70 = ssub.s32 %s67, %s68
      %s71 = sor.u32 %s69, %s70
      %p72 = scmp.eq.s32.totalorder %s71, 0
      %s74 = sadd.s32 %s73, 1
      %s75 = scalar_select %p72, %s73, %s74
      %p78 = pneg %p72
      %p79 = scmp.eq.s32.totalorder %s19, 1
      %p80 = por %p78, %p79
      %p81 = scmp.ne.s32.totalorder %s73, %s76
      %p82 = scmp.eq.s32.totalorder %s19, 0
      %p83 = por %p81, %p82
      %p84 = scmp.ne.s32.totalorder %s73, %s76
      %p85 = scmp.eq.s32.totalorder %s24, 1
      %p86 = por %p84, %p85
      %p87 = scmp.ne.s32.totalorder %s76, %s77
      %p88 = scmp.eq.s32.totalorder %s24, 0
      %p89 = por %p87, %p88
      %p90 = scmp.ne.s32.totalorder %s76, %s77
      %p91 = scmp.eq.s32.totalorder %s25, 1
      %p92 = por %p90, %p91
      %p94 = scmp.ne.s32.totalorder %s77, %s93
      %p95 = scmp.eq.s32.totalorder %s25, 0
      %p96 = por %p94, %p95
      %s98 = sadd.s32 %s97, 1
      %p101 = scmp.eq.s32.totalorder %s19, 1
      %p102 = scmp.ne.s32.totalorder %s97, %s99
      %p103 = scmp.eq.s32.totalorder %s19, 0
      %p104 = por %p102, %p103
      %p105 = scmp.ne.s32.totalorder %s97, %s99
      %p106 = scmp.eq.s32.totalorder %s24, 1
      %p107 = por %p105, %p106
      %p108 = scmp.ne.s32.totalorder %s99, %s100
      %p109 = scmp.eq.s32.totalorder %s24, 0
      %p110 = por %p108, %p109
      %p111 = scmp.ne.s32.totalorder %s99, %s100
      %p112 = scmp.eq.s32.totalorder %s25, 1
      %p113 = por %p111, %p112
      %p115 = scmp.ne.s32.totalorder %s100, %s114
      %p116 = scmp.eq.s32.totalorder %s25, 0
      %p117 = por %p115, %p116
      %s119 = sadd.s32 %s118, 1
      %p122 = scmp.eq.s32.totalorder %s19, 1
      %p123 = scmp.ne.s32.totalorder %s118, %s120
      %p124 = scmp.eq.s32.totalorder %s19, 0
      %p125 = por %p123, %p124
      %p126 = scmp.ne.s32.totalorder %s118, %s120
      %p127 = scmp.eq.s32.totalorder %s24, 1
      %p128 = por %p126, %p127
      %p129 = scmp.ne.s32.totalorder %s120, %s121
      %p130 = scmp.eq.s32.totalorder %s24, 0
      %p131 = por %p129, %p130
      %p132 = scmp.ne.s32.totalorder %s120, %s121
      %p133 = scmp.eq.s32.totalorder %s25, 1
      %p134 = por %p132, %p133
      %p136 = scmp.ne.s32.totalorder %s121, %s135
      %p137 = scmp.eq.s32.totalorder %s25, 0
      %p138 = por %p136, %p137
      %s139 = ssub.s32 %s26, %s38
      %s140 = ssub.s32 %s27, %s34
      %s141 = sor.u32 %s139, %s140
      %p142 = scmp.eq.s32.totalorder %s141, 0
      %s144 = sadd.s32 %s143, 1
      %s145 = scalar_select %p142, %s143, %s144
      %p148 = pneg %p142
      %p149 = scmp.eq.s32.totalorder %s19, 1
      %p150 = por %p148, %p149
      %p151 = scmp.ne.s32.totalorder %s143, %s146
      %p152 = scmp.eq.s32.totalorder %s19, 0
      %p153 = por %p151, %p152
      %p154 = scmp.ne.s32.totalorder %s143, %s146
      %p155 = scmp.eq.s32.totalorder %s24, 1
      %p156 = por %p154, %p155
      %p157 = scmp.ne.s32.totalorder %s146, %s147
      %p158 = scmp.eq.s32.totalorder %s24, 0
      %p159 = por %p157, %p158
      %p160 = scmp.ne.s32.totalorder %s146, %s147
      %p161 = scmp.eq.s32.totalorder %s25, 1
      %p162 = por %p160, %p161
      %p164 = scmp.ne.s32.totalorder %s147, %s163
      %p165 = scmp.eq.s32.totalorder %s25, 0
      %p166 = por %p164, %p165
      %p167 = scmp.le.s32.totalorder 1, %s19
      %p168 = scmp.lt.s32.totalorder %s19, 3
      %p169 = pnand %p167, %p168
      %p170 = pneg %p169
      // Predicated region
      $region9: #{tpu_custom_call.1} parent=5 // pred_check
        _
      $region10: #{tpu_custom_call.1} parent=5 // pred_check_branch
        %172 = sbr.rel (%p169) target = $region12
      $region11: #{tpu_custom_call.1} parent=5 // pred_region
        %s173 = ssub.s32 %s19, 1
        // Predicated region
        $region13: #{tpu_custom_call.1} parent=11 // pred_check
          %p174 = pneg %p110
        $region14: #{tpu_custom_call.1} parent=11 // pred_check_branch
          %176 = sbr.rel (%p174) target = $region16
        $region15: #{tpu_custom_call.1} parent=11 // pred_region
          _
        $region16: #{tpu_custom_call.1} parent=11 // pred_fallthru
          _
        // Predicated region
        $region17: #{tpu_custom_call.1} parent=11 // pred_check
          %p177 = pneg %p131
        $region18: #{tpu_custom_call.1} parent=11 // pred_check_branch
          %179 = sbr.rel (%p177) target = $region20
        $region19: #{tpu_custom_call.1} parent=11 // pred_region
          _
        $region20: #{tpu_custom_call.1} parent=11 // pred_fallthru
          _
      $region12: #{tpu_custom_call.1} parent=5 // pred_fallthru
        _
      %p180 = scmp.lt.s32.totalorder %s19, 2
      // Predicated region
      $region21: #{tpu_custom_call.1} parent=5 // pred_check
        %p181 = pneg %p180
      $region22: #{tpu_custom_call.1} parent=5 // pred_check_branch
        %183 = sbr.rel (%p181) target = $region24
      $region23: #{tpu_custom_call.1} parent=5 // pred_region
        // Predicated region
        $region25: #{tpu_custom_call.1} parent=23 // pred_check
          %p184 = pneg %p53
        $region26: #{tpu_custom_call.1} parent=23 // pred_check_branch
          %186 = sbr.rel (%p184) target = $region28
        $region27: #{tpu_custom_call.1} parent=23 // pred_region
          %s187 = sand.u32 %s43, 1
          %s188 = scalar_lea.sflag [#allocation3], %s187
          %s189 = sand.u32 %s43, 1
          %s190 = smul.addr %s189, 4
          %s191 = scalar_lea.vmem [#allocation2], %s190
          %193 = vsyncadd %s188, 0
          %s194 = smul.addr %s26, 2
          %s195 = sadd.s32 %s27, %s194
          %s196 = smul.addr %s195, 4
          %s197 = scalar_lea.hbm %s0, %s196
          %s199 = sshll.u32 %s197, 4
          %s200 = int_to_ptr.hbm [resolvable:$true] %s199
          %s201 = sshll.u32 %s191, 4
          %s202 = int_to_ptr.vmem [resolvable:$true] %s201
          %204 = dma.hbm_to_vmem [thread:$0]  %s200, 64, %s202, %s188
        $region28: #{tpu_custom_call.1} parent=23 // pred_fallthru
          _
        // Predicated region
        $region29: #{tpu_custom_call.1} parent=23 // pred_check
          %p205 = pneg %p83
        $region30: #{tpu_custom_call.1} parent=23 // pred_check_branch
          %207 = sbr.rel (%p205) target = $region32
        $region31: #{tpu_custom_call.1} parent=23 // pred_region
          %s208 = sand.u32 %s73, 1
          %s209 = scalar_lea.sflag [#allocation6], %s208
          %s210 = sand.u32 %s73, 1
          %s211 = smul.addr %s210, 4
          %s212 = scalar_lea.vmem [#allocation5], %s211
          %s213 = sadd.s32 %s27, 1
          %215 = vsyncadd %s209, 0
          %s216 = smul.addr %s26, 2
          %s217 = sadd.s32 %s213, %s216
          %s218 = smul.addr %s217, 4
          %s219 = scalar_lea.hbm %s1, %s218
          %s221 = sshll.u32 %s219, 4
          %s222 = int_to_ptr.hbm [resolvable:$true] %s221
          %s223 = sshll.u32 %s212, 4
          %s224 = int_to_ptr.vmem [resolvable:$true] %s223
          %226 = dma.hbm_to_vmem [thread:$0]  %s222, 64, %s224, %s209
        $region32: #{tpu_custom_call.1} parent=23 // pred_fallthru
          _
      $region24: #{tpu_custom_call.1} parent=5 // pred_fallthru
        _
      %p227 = scmp.le.s32.totalorder 1, %s19
      %p228 = scmp.lt.s32.totalorder %s19, 3
      %p229 = pnand %p227, %p228
      %p230 = pneg %p229
      // Predicated region
      $region33: #{tpu_custom_call.1} parent=5 // pred_check
        _
      $region34: #{tpu_custom_call.1} parent=5 // pred_check_branch
        %232 = sbr.rel (%p229) target = $region36
      $region35: #{tpu_custom_call.1} parent=5 // pred_region
        %s233 = ssub.s32 %s19, 1
        %s234 = sand.u32 %s46, 1
        %s235 = scalar_lea.sflag [#allocation3], %s234
        %s236 = sand.u32 %s46, 1
        %s237 = smul.addr %s236, 4
        %s238 = scalar_lea.vmem [#allocation2], %s237
        // Predicated region
        $region37: #{tpu_custom_call.1} parent=35 // pred_check
          %p239 = pneg %p59
        $region38: #{tpu_custom_call.1} parent=35 // pred_check_branch
          %241 = sbr.rel (%p239) target = $region40
        $region39: #{tpu_custom_call.1} parent=35 // pred_region
          %243 = dma.done %s235, 64
        $region40: #{tpu_custom_call.1} parent=35 // pred_fallthru
          _
        %s244 = sand.u32 %s76, 1
        %s245 = scalar_lea.sflag [#allocation6], %s244
        %s246 = sand.u32 %s76, 1
        %s247 = smul.addr %s246, 4
        %s248 = scalar_lea.vmem [#allocation5], %s247
        // Predicated region
        $region41: #{tpu_custom_call.1} parent=35 // pred_check
          %p249 = pneg %p89
        $region42: #{tpu_custom_call.1} parent=35 // pred_check_branch
          %251 = sbr.rel (%p249) target = $region44
        $region43: #{tpu_custom_call.1} parent=35 // pred_region
          %253 = dma.done %s245, 64
        $region44: #{tpu_custom_call.1} parent=35 // pred_fallthru
          _
        %s254 = sand.u32 %s46, 1
        %s255 = scalar_lea.sflag [#allocation3], %s254
        %s256 = sand.u32 %s46, 1
        %s257 = smul.addr %s256, 4
        %s258 = scalar_lea.vmem [#allocation2], %s257
        %p259 = pneg %p59
        %p260 = pneg %p56
        %s261 = sand.u32 %s76, 1
        %s262 = scalar_lea.sflag [#allocation6], %s261
        %s263 = sand.u32 %s76, 1
        %s264 = smul.addr %s263, 4
        %s265 = scalar_lea.vmem [#allocation5], %s264
        %p266 = pneg %p89
        %p267 = pneg %p86
        %p268 = pneg %p110
        %p269 = pneg %p107
        %p270 = pneg %p131
        %p271 = pneg %p128
        %p272 = pneg %p159
        %p273 = pneg %p156
        %s274 = sand.u32 %s146, 1
        %s275 = scalar_lea.sflag [#allocation4], %s274
        %s276 = sand.u32 %s146, 1
        %s277 = smul.addr %s276, 8
        %s278 = scalar_lea.vmem [#allocation7], %s277
        %s279 = sadd.s32 %s29, 1
        %v280 = vld [vmem:[%s238] sm:$0xf]
        %v281 = vld [vmem:[%s248] sm:$0xf]
        %v282 = vld [vmem:[%s2] sm:$0xff]
        %v283 = vld [vmem:[%s3] sm:$0xff]
        %285 = vset.pattern.permute.xlu0 0
        %286 = vperm.xlu0 %285, %v283
        %v287 = vpop.permute.xlu0 %286
        %290 = vset.pattern.permute.xlu0 0
        %291 = vperm.xlu0 %290, %v282
        %v292 = vpop.permute.xlu0 %291
        %v294 = vperm.slane %v280, 0
        %v295 = vmul.f32 %v292, %v294
        %v296 = vadd.f32 %v287, %v295
        %297 = vset.pattern.permute.xlu0 3
        %298 = vperm.xlu0 %297, %v282
        %v299 = vpop.permute.xlu0 %298
        %v301 = vperm.slane %v280, 1
        %v302 = vmul.f32 %v299, %v301
        %v303 = vadd.f32 %v296, %v302
        %304 = vset.pattern.permute.xlu0 6
        %305 = vperm.xlu0 %304, %v282
        %v306 = vpop.permute.xlu0 %305
        %v308 = vperm.slane %v280, 2
        %v309 = vmul.f32 %v306, %v308
        %v310 = vadd.f32 %v303, %v309
        %311 = vset.pattern.permute.xlu0 9
        %312 = vperm.xlu0 %311, %v282
        %v313 = vpop.permute.xlu0 %312
        %v315 = vperm.slane %v280, 3
        %v316 = vmul.f32 %v313, %v315
        %v317 = vadd.f32 %v310, %v316
        %318 = vset.pattern.permute.xlu0 1
        %319 = vperm.xlu0 %318, %v282
        %v320 = vpop.permute.xlu0 %319
        %v322 = vperm.slane %v281, 0
        %v323 = vmul.f32 %v320, %v294
        %v324 = vmul.f32 %v320, %v322
        %327 = vrot.lane.b32.xlu0 %v323, 127
        %v328 = vpop.permute.xlu0 %327
        %329 = vrot.lane.b32.xlu0 %v324, 127
        %v330 = vpop.permute.xlu0 %329
        %vm331 = vcmask 1039360
        %v332 = vsel %vm331, %v328, %v330
        %v334 = vadd.f32 %v317, %v332
        %335 = vset.pattern.permute.xlu0 4
        %336 = vperm.xlu0 %335, %v282
        %v337 = vpop.permute.xlu0 %336
        %v339 = vperm.slane %v281, 1
        %v340 = vmul.f32 %v337, %v301
        %v341 = vmul.f32 %v337, %v339
        %344 = vrot.lane.b32.xlu0 %v340, 127
        %v345 = vpop.permute.xlu0 %344
        %346 = vrot.lane.b32.xlu0 %v341, 127
        %v347 = vpop.permute.xlu0 %346
        %v348 = vsel %vm331, %v345, %v347
        %v350 = vadd.f32 %v334, %v348
        %351 = vset.pattern.permute.xlu0 7
        %352 = vperm.xlu0 %351, %v282
        %v353 = vpop.permute.xlu0 %352
        %v355 = vperm.slane %v281, 2
        %v356 = vmul.f32 %v353, %v308
        %v357 = vmul.f32 %v353, %v355
        %360 = vrot.lane.b32.xlu0 %v356, 127
        %v361 = vpop.permute.xlu0 %360
        %362 = vrot.lane.b32.xlu0 %v357, 127
        %v363 = vpop.permute.xlu0 %362
        %v364 = vsel %vm331, %v361, %v363
        %v366 = vadd.f32 %v350, %v364
        %367 = vset.pattern.permute.xlu0 10
        %368 = vperm.xlu0 %367, %v282
        %v369 = vpop.permute.xlu0 %368
        %v371 = vperm.slane %v281, 3
        %v372 = vmul.f32 %v369, %v315
        %v373 = vmul.f32 %v369, %v371
        %376 = vrot.lane.b32.xlu0 %v372, 127
        %v377 = vpop.permute.xlu0 %376
        %378 = vrot.lane.b32.xlu0 %v373, 127
        %v379 = vpop.permute.xlu0 %378
        %v380 = vsel %vm331, %v377, %v379
        %v382 = vadd.f32 %v366, %v380
        %383 = vset.pattern.permute.xlu0 2
        %384 = vperm.xlu0 %383, %v282
        %v385 = vpop.permute.xlu0 %384
        %v387 = vmul.f32 %v385, %v294
        %v388 = vmul.f32 %v385, %v322
        %391 = vrot.lane.b32.xlu0 %v387, 126
        %v392 = vpop.permute.xlu0 %391
        %393 = vrot.lane.b32.xlu0 %v388, 126
        %v394 = vpop.permute.xlu0 %393
        %vm395 = vcmask 1031168
        %v396 = vsel %vm395, %v392, %v394
        %v398 = vadd.f32 %v382, %v396
        %399 = vset.pattern.permute.xlu0 5
        %400 = vperm.xlu0 %399, %v282
        %v401 = vpop.permute.xlu0 %400
        %v403 = vmul.f32 %v401, %v301
        %v404 = vmul.f32 %v401, %v339
        %407 = vrot.lane.b32.xlu0 %v403, 126
        %v408 = vpop.permute.xlu0 %407
        %409 = vrot.lane.b32.xlu0 %v404, 126
        %v410 = vpop.permute.xlu0 %409
        %v411 = vsel %vm395, %v408, %v410
        %v413 = vadd.f32 %v398, %v411
        %414 = vset.pattern.permute.xlu0 8
        %415 = vperm.xlu0 %414, %v282
        %v416 = vpop.permute.xlu0 %415
        %v418 = vmul.f32 %v416, %v308
        %v419 = vmul.f32 %v416, %v355
        %422 = vrot.lane.b32.xlu0 %v418, 126
        %v423 = vpop.permute.xlu0 %422
        %424 = vrot.lane.b32.xlu0 %v419, 126
        %v425 = vpop.permute.xlu0 %424
        %v426 = vsel %vm395, %v423, %v425
        %v428 = vadd.f32 %v413, %v426
        %429 = vset.pattern.permute.xlu0 11
        %430 = vperm.xlu0 %429, %v282
        %v431 = vpop.permute.xlu0 %430
        %v433 = vmul.f32 %v431, %v315
        %v434 = vmul.f32 %v431, %v371
        %437 = vrot.lane.b32.xlu0 %v433, 126
        %v438 = vpop.permute.xlu0 %437
        %439 = vrot.lane.b32.xlu0 %v434, 126
        %v440 = vpop.permute.xlu0 %439
        %v441 = vsel %vm395, %v438, %v440
        %v443 = vadd.f32 %v428, %v441
        %444 = vst [vmem:[%s278] sm:$0xff] %v443
        %s445 = sand.u32 %s146, 1
        %s446 = scalar_lea.sflag [#allocation4], %s445
        %s447 = sand.u32 %s146, 1
        %s448 = smul.addr %s447, 8
        %s449 = scalar_lea.vmem [#allocation7], %s448
        // Predicated region
        $region45: #{tpu_custom_call.1} parent=35 // pred_check
          %p450 = pneg %p156
        $region46: #{tpu_custom_call.1} parent=35 // pred_check_branch
          %452 = sbr.rel (%p450) target = $region48
        $region47: #{tpu_custom_call.1} parent=35 // pred_region
          %454 = vsyncadd %s446, 0
          %s455 = sadd.s32 %s29, %s28
          %s456 = smul.addr %s455, 8
          %s457 = scalar_lea.hbm %s4, %s456
          %s459 = sshll.u32 %s449, 4
          %s460 = int_to_ptr.vmem [resolvable:$true] %s459
          %s461 = sshll.u32 %s457, 4
          %s462 = int_to_ptr.hbm [resolvable:$true] %s461
          %464 = dma.vmem_to_hbm [thread:$0]  %s460, 128, %s462, %s446
        $region48: #{tpu_custom_call.1} parent=35 // pred_fallthru
          _
      $region36: #{tpu_custom_call.1} parent=5 // pred_fallthru
        _
      %p465 = scmp.le.s32.totalorder 2, %s19
      // Predicated region
      $region49: #{tpu_custom_call.1} parent=5 // pred_check
        %p466 = pneg %p465
      $region50: #{tpu_custom_call.1} parent=5 // pred_check_branch
        %468 = sbr.rel (%p466) target = $region52
      $region51: #{tpu_custom_call.1} parent=5 // pred_region
        %s469 = ssub.s32 %s19, 2
        // Predicated region
        $region53: #{tpu_custom_call.1} parent=51 // pred_check
          %p470 = pneg %p162
        $region54: #{tpu_custom_call.1} parent=51 // pred_check_branch
          %472 = sbr.rel (%p470) target = $region56
        $region55: #{tpu_custom_call.1} parent=51 // pred_region
          %s473 = sand.u32 %s147, 1
          %s474 = scalar_lea.sflag [#allocation4], %s473
          %s475 = sand.u32 %s147, 1
          %s476 = smul.addr %s475, 8
          %s477 = scalar_lea.vmem [#allocation7], %s476
          %479 = dma.done %s474, 128
        $region56: #{tpu_custom_call.1} parent=51 // pred_fallthru
          _
      $region52: #{tpu_custom_call.1} parent=5 // pred_fallthru
        _
    $region6: #{tpu_custom_call.1} parent=1 // loop_footer
      %s23 = sadd.s32 1, %s19
    $region7: #{tpu_custom_call.1} parent=1 // loop_footer_branch
      %18 = sbr.rel target = $region3
    $region8: #{tpu_custom_call.1} parent=1 // loop_exit
      _
    %480 = vsyncpa [#allocation3], 1
    %s481 = scalar_lea.sflag [#allocation3], 1
    %482 = vsyncpa %s481, 1
    %483 = vsyncpa [#allocation6], 1
    %s484 = scalar_lea.sflag [#allocation6], 1
    %485 = vsyncpa %s484, 1
    %486 = vsyncpa [#allocation4], 1
    %s487 = scalar_lea.sflag [#allocation4], 1
    %488 = vsyncpa %s487, 1

</llo_original>
